<compile_context>
chip_gen: v5e
topology: v5e:2x2
jax: 0.10.0
libtpu: 0.0.40
codegen_flags: <defaults>
</compile_context>

<pallas_src>
import functools

import jax
import jax.numpy as jnp
from jax import lax
from jax.experimental import pallas as pl
from jax.experimental.pallas import tpu as pltpu

LAMBDA_LAND = 50.0
LAMBDA_SEG = 0.001   # SegmentationLoss term: untranslatable, omitted (see TODO below)
LAMBDA_PHO = 2.5     # constructed but unused in FullLoss.forward
LAMBDA_PER = 1.0     # constructed but unused in FullLoss.forward
LAMBDA_SMO = 10.0
LAMBDA_DIS = 1.0


def _lane_fold_128(v):
    """Reduce the lane axis of (S, T) down to (S, 128).

    Only slices at multiples of 128 lanes (vreg boundaries, no relayout) and a
    tree of VALU adds (short dependency chains).  Requires T % 128 == 0 when
    T > 128; T <= 128 is returned unchanged.
    """
    t = v.shape[-1]
    if t <= 128:
        return v
    assert t % 128 == 0
    tail = None
    while t > 128:
        if (t // 128) % 2 == 1:          # peel one 128-lane group if odd count
            last = v[:, t - 128:t]
            tail = last if tail is None else tail + last
            t -= 128
            v = v[:, :t]
        half = t // 2
        v = v[:, :half] + v[:, half:t]
        t = half
    return v if tail is None else v + tail


def _full_loss_kernel(gp_ref, gg_ref, o_ref,
                      acc_land_ref, acc_smo_ref, carry_ref, *,
                      n_rows, tile, lr, cdim, grid_n, has_partial, use_direct,
                      land_scale, smo_scale):
    """Fused landmark + smoothness reduction over the packed geometry slab.

    gp_ref, gg_ref : (n_rows, tile) tile of the packed (n_rows, lr) slabs.
    o_ref          : (1, 1) f32 result, written only on the last grid step.
    acc_*_ref      : (n_rows, 128) f32 running partial sums (resident).
    carry_ref      : (n_rows, 128) f32; lanes 0..cdim-1 hold the previous
                     tile's last cdim columns (stride-cdim pairs across tiles).
    """
    x = gp_ref[...].astype(jnp.float32)
    g = gg_ref[...].astype(jnp.float32)

    if use_direct:
        # Whole problem is a single sub-128-lane tile: compute directly.
        d = x - g
        land = jnp.sum(d * d)
        if lr > cdim:
            ds = x[:, cdim:] - x[:, :lr - cdim]
            smo = jnp.sum(ds * ds)
        else:
            smo = jnp.float32(0.0)
        o_ref[...] = jnp.reshape(land_scale * land + smo_scale * smo, (1, 1))
        return

    k = pl.program_id(0)

    @pl.when(k == 0)
    def _init():
        acc_land_ref[...] = jnp.zeros_like(acc_land_ref)
        acc_smo_ref[...] = jnp.zeros_like(acc_smo_ref)
        # Hygiene only: the carry is never semantically consumed at k == 0
        # (the k > 0 select below discards it), but never read uninitialized VMEM.
        carry_ref[...] = jnp.zeros_like(carry_ref)

    def full_tile():
        # ---- landmark partial: sum((gp - gg)^2) ----
        d = x - g
        acc_land_ref[...] += _lane_fold_128(d * d)

        # ---- smoothness partial: previous-node values via XLU lane rotation ----
        xr = pltpu.roll(x, cdim, 1)            # xr[:, q] = x[:, (q - cdim) % tile]
        ds = x - xr
        acc_smo_ref[...] += _lane_fold_128(ds * ds)

        # Lanes 0..cdim-1 wrapped around: remove their (wrong) contribution and
        # add the correct pairing against the previous tile's last cdim columns.
        firstc = x[:, 0:cdim]
        wrongc = firstc - xr[:, 0:cdim]        # xr[:, 0:cdim] == x[:, tile-cdim:tile]
        fix = -(wrongc * wrongc)
        if grid_n > 1:
            dprev = firstc - carry_ref[:, 0:cdim]
            fix = fix + jnp.where(k > 0, dprev * dprev, 0.0)
        acc_smo_ref[:, 0:cdim] += fix
        if grid_n > 1:
            carry_ref[...] = xr[:, 0:128]      # lanes 0..cdim-1 hold x[:, tile-cdim:]

    def partial_tile():
        # Only the final, partial tile pays for iota/compare/where masking.
        vt = lr - (grid_n - 1) * tile          # valid columns in this tile (static)
        lane = lax.broadcasted_iota(jnp.int32, (n_rows, tile), 1)
        valid = lane < vt

        d = jnp.where(valid, x - g, 0.0)
        acc_land_ref[...] += _lane_fold_128(d * d)

        xr = pltpu.roll(x, cdim, 1)
        ds = jnp.where(jnp.logical_and(valid, lane >= cdim), x - xr, 0.0)
        acc_smo_ref[...] += _lane_fold_128(ds * ds)

        # Lanes 0..cdim-1 pair with the carry (k == grid_n - 1 >= 1 here).
        mc = lax.broadcasted_iota(jnp.int32, (n_rows, cdim), 1) < vt
        dc = jnp.where(mc, x[:, 0:cdim] - carry_ref[:, 0:cdim], 0.0)
        acc_smo_ref[:, 0:cdim] += dc * dc

    if has_partial:
        pl.when(k < grid_n - 1)(full_tile)
        pl.when(k == grid_n - 1)(partial_tile)
    else:
        full_tile()

    @pl.when(k == grid_n - 1)
    def _finalize():
        total = (land_scale * jnp.sum(acc_land_ref[...])
                 + smo_scale * jnp.sum(acc_smo_ref[...]))
        o_ref[...] = jnp.reshape(total, (1, 1))


def full_loss(rendered_img, real_img, geometry_pred, geometry_graph,
              expression_params, *, max_tile_cols=None,
              target_buffer_bytes=4 * 1024 * 1024):
    # rendered_img / real_img (NCHW) are accepted for API parity; they are only
    # consumed by the untranslatable SegmentationLoss branch.
    del rendered_img, real_img

    b, ng, cdim = geometry_pred.shape
    total_cols = ng * cdim

    # Sublane packing (review #4): fold each batch row into R sub-rows so the
    # sublane axis of every vreg is (close to) full even for tiny batches.
    fold = 1
    if b < 8:
        for r in range(min(8 // b, total_cols), 0, -1):
            if total_cols % r == 0 and (total_cols // r) >= cdim:
                fold = r
                break
    n_rows = b * fold
    lr = total_cols // fold

    # Free, contiguous reshapes: (B, Ng, 3) -> (B*R, Ng*3/R).  Native dtype.
    gp = jnp.reshape(geometry_pred, (n_rows, lr))
    gg = jnp.reshape(geometry_graph, (n_rows, lr))

    # Tile the column axis: lane-dense, multiple of 128, ~4 MiB per buffer.
    itemsize = jnp.dtype(geometry_pred.dtype).itemsize
    target_cols = max(128, (target_buffer_bytes // (n_rows * itemsize)) // 128 * 128)
    if max_tile_cols is not None:
        target_cols = max(128, (max_tile_cols // 128) * 128)
    if lr <= 128:
        tile = lr                                  # single full-extent block
    else:
        tile = min(target_cols, (lr // 128) * 128)  # multiple of 128
    grid_n = pl.cdiv(lr, tile)
    has_partial = (lr % tile) != 0
    use_direct = (grid_n == 1) and (tile % 128 != 0)

    land_scale = LAMBDA_LAND / float(b * total_cols)   # mean over B*Ng*3
    smo_scale = LAMBDA_SMO / float(b * cdim)           # sum_i MSE_i == sum / (B*3)

    kernel = functools.partial(
        _full_loss_kernel,
        n_rows=n_rows, tile=tile, lr=lr, cdim=cdim, grid_n=grid_n,
        has_partial=has_partial, use_direct=use_direct,
        land_scale=land_scale, smo_scale=smo_scale)

    out = pl.pallas_call(
        kernel,
        out_shape=jax.ShapeDtypeStruct((1, 1), jnp.float32),
        grid_spec=pltpu.PrefetchScalarGridSpec(
            num_scalar_prefetch=0,
            grid=(grid_n,),
            in_specs=[
                pl.BlockSpec((n_rows, tile), lambda k: (0, k)),
                pl.BlockSpec((n_rows, tile), lambda k: (0, k)),
            ],
            out_specs=pl.BlockSpec((1, 1), lambda k: (0, 0)),
            scratch_shapes=[
                pltpu.VMEM((n_rows, 128), jnp.float32),   # landmark partials
                pltpu.VMEM((n_rows, 128), jnp.float32),   # smoothness partials
                pltpu.VMEM((n_rows, 128), jnp.float32),   # cross-tile carry
            ]),
        compiler_params=pltpu.CompilerParams(
            dimension_semantics=("arbitrary",),          # sequential reduction axis
            vmem_limit_bytes=32 * 1024 * 1024,
        ),
    )(gp, gg)

    # Tiny terms handled in plain JAX (perf review #8): Ldis and the R-1
    # fold-boundary smoothness pairs per batch row (6*B*(R-1) elements total).
    ex = expression_params.astype(jnp.float32)
    l_dis = jnp.sum(ex * ex)

    if fold > 1:
        heads = gp[1:, 0:cdim].astype(jnp.float32)
        tails = gp[:-1, lr - cdim:lr].astype(jnp.float32)
        d = heads - tails
        row_ok = (jnp.arange(1, n_rows) % fold) != 0     # skip each batch's first row
        straddle = jnp.sum(jnp.where(row_ok[:, None], d * d, 0.0))
    else:
        straddle = jnp.float32(0.0)

    # TODO(synk): SegmentationLoss (pretrained DeepLabV3 + cv2.distanceTransform /
    # cv2.findContours) has no Pallas equivalent; its 0.001 * Lseg term is omitted.
    return out[0, 0] + smo_scale * straddle + LAMBDA_DIS * l_dis


def _full_loss_ref(geometry_pred, geometry_graph, expression_params):
    """Pure-JAX reference mirroring the PyTorch semantics (with Lseg = 0)."""
    gp = geometry_pred.astype(jnp.float32)
    gg = geometry_graph.astype(jnp.float32)
    ex = expression_params.astype(jnp.float32)
    b, _, c = gp.shape
    l_land = jnp.mean((gp - gg) ** 2)
    l_smo = jnp.sum((gp[:, 1:, :] - gp[:, :-1, :]) ** 2) / (b * c)
    l_dis = jnp.sum(ex ** 2)
    return LAMBDA_LAND * l_land + LAMBDA_SMO * l_smo + LAMBDA_DIS * l_dis


if __name__ == "__main__":
    key = jax.random.PRNGKey(0)
    k1, k2, k3, k4, k5 = jax.random.split(key, 5)

    B, C, H, W = 2, 3, 16, 16   # image batch (NCHW), only used by the seg branch
    Ng = 16                     # number of geometry nodes
    E = 32                      # expression parameter dim

    rendered_img = jax.random.normal(k1, (B, C, H, W), jnp.float32)
    real_img = jax.random.normal(k2, (B, C, H, W), jnp.float32)
    geometry_pred = jax.random.normal(k3, (B, Ng, 3), jnp.float32)
    geometry_graph = jax.random.normal(k4, (B, Ng, 3), jnp.float32)
    expression_params = jax.random.normal(k5, (B, E), jnp.float32)

    # Config 1: tiny single-tile path (sublane-packed to 8 rows).
    out = full_loss(rendered_img, real_img, geometry_pred, geometry_graph,
                    expression_params)
    out = jax.block_until_ready(out)
    ref = _full_loss_ref(geometry_pred, geometry_graph, expression_params)
    assert jnp.allclose(out, ref, rtol=1e-4, atol=1e-4), (out, ref)

    # Config 2: forces a multi-tile grid with a masked partial last tile, so the
    # cross-tile carry, accumulator init/finalize and masking paths are exercised.
    Ng2 = 200
    gp2 = jax.random.normal(jax.random.PRNGKey(1), (B, Ng2, 3), jnp.float32)
    gg2 = jax.random.normal(jax.random.PRNGKey(2), (B, Ng2, 3), jnp.float32)
    out2 = full_loss(rendered_img, real_img, gp2, gg2, expression_params,
                     max_tile_cols=128)
    out2 = jax.block_until_ready(out2)
    ref2 = _full_loss_ref(gp2, gg2, expression_params)
    assert jnp.allclose(out2, ref2, rtol=1e-4, atol=1e-4), (out2, ref2)

    print("KERNEL_OK")
</pallas_src>

<mosaic_0001>
module attributes {stable_mosaic.version = 11 : i64} {
  func.func @_full_loss_kernel(%arg0: i32, %arg1: memref<8x12xf32, #tpu.memory_space<vmem>>, %arg2: memref<8x12xf32, #tpu.memory_space<vmem>>, %arg3: memref<1x1xf32, #tpu.memory_space<vmem>>, %arg4: memref<8x128xf32, #tpu.memory_space<vmem>>, %arg5: memref<8x128xf32, #tpu.memory_space<vmem>>, %arg6: memref<8x128xf32, #tpu.memory_space<vmem>>) attributes {dimension_semantics = [#tpu.dimension_semantics<arbitrary>], iteration_bounds = array<i64: 1>, scalar_prefetch = 0 : i64, scratch_operands = 3 : i64, tpu.core_type = #tpu.core_type<tc>, window_params = [{transform_indices = @transform_0, window_bounds = array<i64: 8, 12>}, {transform_indices = @transform_1, window_bounds = array<i64: 8, 12>}, {pipeline_mode = #tpu.pipeline_mode<synchronous>, transform_indices = @transform_2, window_bounds = array<i64: 1, 1>}]} {
    %c0 = arith.constant 0 : index
    %c0_0 = arith.constant 0 : index
    %0 = vector.load %arg1[%c0, %c0_0] : memref<8x12xf32, #tpu.memory_space<vmem>>, vector<8x12xf32>
    %c0_1 = arith.constant 0 : index
    %c0_2 = arith.constant 0 : index
    %1 = vector.load %arg2[%c0_1, %c0_2] : memref<8x12xf32, #tpu.memory_space<vmem>>, vector<8x12xf32>
    %2 = arith.subf %0, %1 : vector<8x12xf32>
    %3 = arith.mulf %2, %2 : vector<8x12xf32>
    %4 = vector.shape_cast %3 : vector<8x12xf32> to vector<1x8x12xf32>
    %cst = arith.constant dense<0.000000e+00> : vector<1xf32>
    %5 = vector.multi_reduction <add>, %4, %cst [1, 2] : vector<1x8x12xf32> to vector<1xf32>
    %6 = vector.shape_cast %5 : vector<1xf32> to vector<1x1x1xf32>
    %7 = vector.extract %6[0, 0, 0] : f32 from vector<1x1x1xf32>
    %8 = vector.extract_strided_slice %0 {offsets = [0, 3], sizes = [8, 9], strides = [1, 1]} : vector<8x12xf32> to vector<8x9xf32>
    %9 = vector.extract_strided_slice %0 {offsets = [0, 0], sizes = [8, 9], strides = [1, 1]} : vector<8x12xf32> to vector<8x9xf32>
    %10 = arith.subf %8, %9 : vector<8x9xf32>
    %11 = arith.mulf %10, %10 : vector<8x9xf32>
    %12 = vector.shape_cast %11 : vector<8x9xf32> to vector<1x8x9xf32>
    %cst_3 = arith.constant dense<0.000000e+00> : vector<1xf32>
    %13 = vector.multi_reduction <add>, %12, %cst_3 [1, 2] : vector<1x8x9xf32> to vector<1xf32>
    %14 = vector.shape_cast %13 : vector<1xf32> to vector<1x1x1xf32>
    %15 = vector.extract %14[0, 0, 0] : f32 from vector<1x1x1xf32>
    %cst_4 = arith.constant 0.520833313 : f32
    %16 = arith.mulf %cst_4, %7 : f32
    %cst_5 = arith.constant 1.66666663 : f32
    %17 = arith.mulf %cst_5, %15 : f32
    %18 = arith.addf %16, %17 : f32
    %19 = vector.broadcast %18 : f32 to vector<1x1xf32>
    %c0_6 = arith.constant 0 : index
    %c0_7 = arith.constant 0 : index
    %20 = vector.load %arg3[%c0_6, %c0_7] : memref<1x1xf32, #tpu.memory_space<vmem>>, vector<1x1xf32>
    tpu.vector_store %arg3[%c0_6, %c0_7], %19 {strides = array<i32>} : memref<1x1xf32, #tpu.memory_space<vmem>>, vector<1x1xf32>,
    return
  }
  func.func @transform_0(%arg0: i32) -> (i32, i32) {
    %c0_i32 = arith.constant 0 : i32
    %c0_i32_0 = arith.constant 0 : i32
    return %c0_i32, %arg0 : i32, i32
  }
  func.func @transform_1(%arg0: i32) -> (i32, i32) {
    %c0_i32 = arith.constant 0 : i32
    %c0_i32_0 = arith.constant 0 : i32
    return %c0_i32, %arg0 : i32, i32
  }
  func.func @transform_2(%arg0: i32) -> (i32, i32) {
    %c0_i32 = arith.constant 0 : i32
    %c0_i32_0 = arith.constant 0 : i32
    %c0_i32_1 = arith.constant 0 : i32
    return %c0_i32, %c0_i32_0 : i32, i32
  }
}

</mosaic_0001>

<llo_original>
// kernel: tpu_custom_call.1
$region0: #{tpu_custom_call.1}
  #allocation0 [shape = 'u32[]', space=smem, size = 0x4, offset = 0x4, fixed_abs, tag = 'smem constant byte address 0x4 - core index']
  #allocation1 [shape = 'u32[72,128]{1,0:T(1,128)}', space=vmem, size = 0x9000, scoped, tag = 'internal scratch']
  #allocation2 [shape = 'f32[8,128]{1,0:T(8,128)}', space=vmem, size = 0x1000, scoped, tag = 'scratch operand']
  #allocation3 [shape = 'f32[8,128]{1,0:T(8,128)}', space=vmem, size = 0x1000, scoped, tag = 'scratch operand']
  #allocation4 [shape = 'f32[8,128]{1,0:T(8,128)}', space=vmem, size = 0x1000, scoped, tag = 'scratch operand']
  %s0 = inlined_call_operand.hbm [shape: f32[8,12], index: 0, kind: input, shape index: {}]
  %s1 = inlined_call_operand.hbm [shape: f32[8,12], index: 1, kind: input, shape index: {}]
  %s2 = inlined_call_operand.hbm [shape: f32[1,1], index: 2, kind: output, shape index: {}]
  %s3 = sld [smem:[#allocation0]]
  $region26: #{tpu_custom_call.1} parent=0
    _
  %s5 = ssub.s32 1, %s3
  %s6 = scalar_select 0, %s5, %s3
  $region1: #{tpu_custom_call.1} parent=0
    #allocation5 [shape = 'u8[4096]{0}', space=vmem, size = 0x1000, scoped, tag = 'input window, operand 0, single buffered']
    #allocation6 [shape = 's32[1]{0}', space=sflag, size = 0x4, scoped, tag = 'scoped memory for tpu_custom_call.1']
    #allocation7 [shape = 's32[1]{0}', space=sflag, size = 0x4, scoped, tag = 'scoped memory for tpu_custom_call.1']
    #allocation8 [shape = 'u8[4096]{0}', space=vmem, size = 0x1000, scoped, tag = 'input window, operand 1, single buffered']
    #allocation9 [shape = 's32[1]{0}', space=sflag, size = 0x4, scoped, tag = 'scoped memory for tpu_custom_call.1']
    #allocation10 [shape = 'u8[512]{0}', space=vmem, size = 0x400, scoped, tag = 'output window, operand 0, single buffered']
    %7 = vsyncpa [#allocation6], 0
    %8 = vsyncpa [#allocation9], 0
    %9 = vsyncpa [#allocation7], 0
    // Predicated region
    $region2: #{tpu_custom_call.1} parent=1 // pred_check
      _
    $region3: #{tpu_custom_call.1} parent=1 // pred_check_branch
      %11 = sbr.rel (0) target = $region5
    $region4: #{tpu_custom_call.1} parent=1 // pred_region
      %13 = vsyncadd [#allocation6], 0
      %s15 = sshll.u32 %s0, 4
      %s16 = int_to_ptr.hbm [resolvable:$true] %s15
      %s17 = sshll.u32 [#allocation5], 4
      %s18 = int_to_ptr.vmem [resolvable:$true] %s17
      %20 = dma.hbm_to_vmem [thread:$0]  %s16, 128, %s18, [#allocation6]
    $region5: #{tpu_custom_call.1} parent=1 // pred_fallthru
      _
    // Predicated region
    $region6: #{tpu_custom_call.1} parent=1 // pred_check
      _
    $region7: #{tpu_custom_call.1} parent=1 // pred_check_branch
      %22 = sbr.rel (0) target = $region9
    $region8: #{tpu_custom_call.1} parent=1 // pred_region
      %24 = vsyncadd [#allocation9], 0
      %s26 = sshll.u32 %s1, 4
      %s27 = int_to_ptr.hbm [resolvable:$true] %s26
      %s28 = sshll.u32 [#allocation8], 4
      %s29 = int_to_ptr.vmem [resolvable:$true] %s28
      %31 = dma.hbm_to_vmem [thread:$0]  %s27, 128, %s29, [#allocation9]
    $region9: #{tpu_custom_call.1} parent=1 // pred_fallthru
      _
    // Predicated region
    $region10: #{tpu_custom_call.1} parent=1 // pred_check
      _
    $region11: #{tpu_custom_call.1} parent=1 // pred_check_branch
      %33 = sbr.rel (0) target = $region13
    $region12: #{tpu_custom_call.1} parent=1 // pred_region
      %35 = dma.done [#allocation6], 128
    $region13: #{tpu_custom_call.1} parent=1 // pred_fallthru
      _
    // Predicated region
    $region14: #{tpu_custom_call.1} parent=1 // pred_check
      _
    $region15: #{tpu_custom_call.1} parent=1 // pred_check_branch
      %37 = sbr.rel (0) target = $region17
    $region16: #{tpu_custom_call.1} parent=1 // pred_region
      %39 = dma.done [#allocation9], 128
    $region17: #{tpu_custom_call.1} parent=1 // pred_fallthru
      _
    %v40 = vld [vmem:[#allocation5] sm:$0xff]
    %v41 = vld [vmem:[#allocation8] sm:$0xff]
    %v42 = vsub.f32 %v40, %v41
    %v43 = vmul.f32 %v42, %v42
    %vm44 = vcmask 97280
    %v45 = vsel %vm44, %v43, 0.0
    %46 = vadd.xlane.f32.xlu0 %v45
    %v47 = vpop.xlane.xlu0 %46
    %v48 = vrot.slane %v47, 4
    %v49 = vadd.f32 %v47, %v48
    %v50 = vrot.slane %v49, 2
    %v51 = vadd.f32 %v49, %v50
    %v52 = vrot.slane %v51, 1
    %v53 = vadd.f32 %v51, %v52
    %s54 = vtos %v53
    %56 = vrot.lane.b32.xlu0 %v40, 3
    %v57 = vpop.permute.xlu0 %56
    %v59 = vsub.f32 %v40, %v57
    %v60 = vmul.f32 %v59, %v59
    %62 = vrot.lane.b32.xlu0 %v60, 125
    %v63 = vpop.permute.xlu0 %62
    %vm65 = vcmask 72704
    %v66 = vsel %vm65, %v63, 0.0
    %67 = vadd.xlane.f32.xlu0 %v66
    %v68 = vpop.xlane.xlu0 %67
    %v69 = vrot.slane %v68, 4
    %v70 = vadd.f32 %v68, %v69
    %v71 = vrot.slane %v70, 2
    %v72 = vadd.f32 %v70, %v71
    %v73 = vrot.slane %v72, 1
    %v74 = vadd.f32 %v72, %v73
    %s75 = vtos %v74
    %s76 = smul.f32 %s54, 0.5208333
    %s77 = smul.f32 %s75, 1.6666666
    %s78 = sadd.f32 %s76, %s77
    %v79 = vstv %s78
    %vm80 = vcmask 0
    %81 = vst.msk [vmem:[#allocation10] sm:$0x1] %vm80, %v79
    // Predicated region
    $region18: #{tpu_custom_call.1} parent=1 // pred_check
      _
    $region19: #{tpu_custom_call.1} parent=1 // pred_check_branch
      %83 = sbr.rel (0) target = $region21
    $region20: #{tpu_custom_call.1} parent=1 // pred_region
      %85 = vsyncadd [#allocation7], 0
      %s87 = sshll.u32 [#allocation10], 4
      %s88 = int_to_ptr.vmem [resolvable:$true] %s87
      %s89 = sshll.u32 %s2, 4
      %s90 = int_to_ptr.hbm [resolvable:$true] %s89
      %92 = dma.vmem_to_hbm [thread:$0]  %s88, 16, %s90, [#allocation7]
    $region21: #{tpu_custom_call.1} parent=1 // pred_fallthru
      _
    // Predicated region
    $region22: #{tpu_custom_call.1} parent=1 // pred_check
      _
    $region23: #{tpu_custom_call.1} parent=1 // pred_check_branch
      %94 = sbr.rel (0) target = $region25
    $region24: #{tpu_custom_call.1} parent=1 // pred_region
      %96 = dma.done [#allocation7], 16
    $region25: #{tpu_custom_call.1} parent=1 // pred_fallthru
      _
    %97 = vsyncpa [#allocation6], 1
    %98 = vsyncpa [#allocation9], 1
    %99 = vsyncpa [#allocation7], 1

</llo_original>
